<compile_context>
chip_gen: v7x
topology: tpu7x:2x2x1
jax: 0.10.0
libtpu: 0.0.40
codegen_flags: <defaults>
</compile_context>

<pallas_src>
import functools
import math

import jax
import jax.numpy as jnp
from jax import lax
from jax.experimental import pallas as pl
from jax.experimental.pallas import tpu as pltpu


_VMEM_LIMIT = 64 * 1024 * 1024


# ----------------------------------------------------------------------------
# Fused MLP-stack kernels
# ----------------------------------------------------------------------------
def _make_fused_mlp_kernel(stage_cfg, n_inputs):
    # stage_cfg: tuple of (num_weight_k_blocks, has_layernorm, relu) per stage.
    def kernel(*refs):
        out_ref = refs[-1]
        pos = 0
        xs = [refs[pos + i][...] for i in range(n_inputs)]
        pos += n_inputs
        h = None
        for si, (n_wb, has_ln, relu) in enumerate(stage_cfg):
            inputs = xs if si == 0 else [h]
            acc = None
            for wi in range(n_wb):
                w = refs[pos][...]
                pos += 1
                part = jnp.dot(inputs[wi].astype(w.dtype), w,
                               preferred_element_type=jnp.float32)
                acc = part if acc is None else acc + part
            b = refs[pos][...].astype(jnp.float32)
            pos += 1
            h = acc + b
            if has_ln:
                g = refs[pos][...]
                beta = refs[pos + 1][...]
                pos += 2
                mu = jnp.mean(h, axis=-1, keepdims=True)
                hc = h - mu
                var = jnp.mean(hc * hc, axis=-1, keepdims=True)
                h = hc * lax.rsqrt(var + 1e-5) * g + beta
            if relu:
                h = jnp.maximum(h, 0.0)
        out_ref[...] = h.astype(out_ref.dtype)
    return kernel


def _make_fused_mlp_ktile_kernel(stage_cfg):
    # First-stage matmul is K-streamed over the grid into a f32 VMEM accumulator;
    # the remaining stages run once, on the last K step (P3 init/finalize).
    def kernel(*refs):
        out_ref = refs[-2]
        acc_ref = refs[-1]
        k = pl.program_id(0)

        @pl.when(k == 0)
        def _():
            acc_ref[...] = jnp.zeros_like(acc_ref)

        x = refs[0][...]
        w0 = refs[1][...]
        acc_ref[...] += jnp.dot(x.astype(w0.dtype), w0,
                                preferred_element_type=jnp.float32)

        @pl.when(k == pl.num_programs(0) - 1)
        def _():
            pos = 2
            h = acc_ref[...]
            for si, (n_wb, has_ln, relu) in enumerate(stage_cfg):
                if si > 0:
                    w = refs[pos][...]
                    pos += 1
                    h = jnp.dot(h.astype(w.dtype), w,
                                preferred_element_type=jnp.float32)
                b = refs[pos][...].astype(jnp.float32)
                pos += 1
                h = h + b
                if has_ln:
                    g = refs[pos][...]
                    beta = refs[pos + 1][...]
                    pos += 2
                    mu = jnp.mean(h, axis=-1, keepdims=True)
                    hc = h - mu
                    var = jnp.mean(hc * hc, axis=-1, keepdims=True)
                    h = hc * lax.rsqrt(var + 1e-5) * g + beta
                if relu:
                    h = jnp.maximum(h, 0.0)
            out_ref[...] = h.astype(out_ref.dtype)
    return kernel


def fused_mlp(xs, stages, out_dim, *, k_tile=None):
    """Run a stack of Linear[+LayerNorm][+ReLU] stages as a single kernel.

    xs: (rows, k) array or list of them feeding the FIRST stage (each paired with
        one K-block of the first weight -> fuses the torch concat).
    stages: list of {"ws": [w, ...], "b": b, "ln": (g, beta) | None, "relu": bool}.
    k_tile: if set (and the first stage has a single input whose K divides it),
        the first-stage matmul is K-streamed over an "arbitrary" grid axis with a
        VMEM accumulator (weight tiles double-buffered by the pipeline).
    """
    if not isinstance(xs, (list, tuple)):
        xs = [xs]
    rows = xs[0].shape[0]
    operands = list(xs)
    stage_cfg = []
    for si, st in enumerate(stages):
        ws = st["ws"]
        assert len(ws) == (len(xs) if si == 0 else 1)
        operands.extend(ws)
        operands.append(st["b"])
        ln = st.get("ln")
        if ln is not None:
            operands.extend(ln)
        stage_cfg.append((len(ws), ln is not None, bool(st.get("relu", False))))
    out_shape = jax.ShapeDtypeStruct((rows, out_dim), jnp.float32)

    k0 = xs[0].shape[1]
    if (k_tile is not None and len(xs) == 1 and k0 % k_tile == 0
            and k0 // k_tile > 1 and rows % 8 == 0):
        nk = k0 // k_tile
        out0 = stages[0]["ws"][0].shape[1]
        kernel = _make_fused_mlp_ktile_kernel(tuple(stage_cfg))
        x_spec = pl.BlockSpec((rows, k_tile), lambda k: (0, k))
        w0_spec = pl.BlockSpec((k_tile, out0), lambda k: (k, 0))
        rest_specs = [pl.BlockSpec(op.shape, lambda k: (0, 0))
                      for op in operands[2:]]
        return pl.pallas_call(
            kernel,
            out_shape=out_shape,
            grid=(nk,),
            in_specs=[x_spec, w0_spec] + rest_specs,
            out_specs=pl.BlockSpec((rows, out_dim), lambda k: (0, 0)),
            scratch_shapes=[pltpu.VMEM((rows, out0), jnp.float32)],
            compiler_params=pltpu.CompilerParams(
                dimension_semantics=("arbitrary",),
                vmem_limit_bytes=_VMEM_LIMIT),
        )(*operands)

    kernel = _make_fused_mlp_kernel(tuple(stage_cfg), len(xs))
    return pl.pallas_call(
        kernel,
        out_shape=out_shape,
        compiler_params=pltpu.CompilerParams(vmem_limit_bytes=_VMEM_LIMIT),
    )(*operands)


# ----------------------------------------------------------------------------
# Fused transformer STACK kernel: all layers in one pallas_call, grid=(L,).
# Per-layer weights are indexed by the grid step; x is carried in the resident
# output block (constant output block index across the "arbitrary" layer axis).
# ----------------------------------------------------------------------------
def _make_transformer_stack_kernel(BN, E, nhead):
    hd = E // nhead
    bf16 = jnp.bfloat16
    f32 = jnp.float32

    def layer_norm(x, g, beta):
        mu = jnp.mean(x, axis=-1, keepdims=True)
        xc = x - mu
        var = jnp.mean(xc * xc, axis=-1, keepdims=True)
        return xc * lax.rsqrt(var + 1e-5) * g + beta

    def kernel(q_ref, k_ref, v_ref, bias_ref,
               wq_ref, bq_ref, wk_ref, bk_ref, wv_ref, bv_ref, wo_ref, bo_ref,
               w1_ref, b1_ref, w2_ref, b2_ref,
               g1_ref, be1_ref, g2_ref, be2_ref, x_ref):
        # x starts as `key` (the W_o output); persists in VMEM across layers.
        @pl.when(pl.program_id(0) == 0)
        def _():
            x_ref[...] = k_ref[...]

        x = x_ref[...]
        q = q_ref[...].astype(bf16)
        k = k_ref[...].astype(bf16)
        v = v_ref[...].astype(bf16)
        bias = bias_ref[...]                         # (nhead*BN, BN), additive

        # Q/K/V projections (1/sqrt(hd) folded into W_q / b_q).
        qp = jnp.dot(q, wq_ref[...], preferred_element_type=f32) + bq_ref[...]
        kp = jnp.dot(k, wk_ref[...], preferred_element_type=f32) + bk_ref[...]
        vp = jnp.dot(v, wv_ref[...], preferred_element_type=f32) + bv_ref[...]

        # All-head scores stacked along sublanes -> ONE softmax over the stack.
        s = jnp.concatenate(
            [lax.dot_general(qp[:, h * hd:(h + 1) * hd].astype(bf16),
                             kp[:, h * hd:(h + 1) * hd].astype(bf16),
                             (((1,), (1,)), ((), ())),
                             preferred_element_type=f32)
             for h in range(nhead)], axis=0) + bias              # (nhead*BN, BN)
        m = jnp.max(s, axis=-1, keepdims=True)
        p = jnp.exp(s - m)
        p = p * pl.reciprocal(jnp.sum(p, axis=-1, keepdims=True), approx=True)

        # Per-head context, concatenated to (BN, E); ONE full-K out-projection dot.
        attn = jnp.concatenate(
            [jnp.dot(p[h * BN:(h + 1) * BN, :].astype(bf16),
                     vp[:, h * hd:(h + 1) * hd].astype(bf16),
                     preferred_element_type=f32)
             for h in range(nhead)], axis=-1)                    # (BN, E)
        attn = jnp.dot(attn.astype(bf16), wo_ref[...],
                       preferred_element_type=f32) + bo_ref[...]

        # residual + norm1
        x = x + attn
        x2 = layer_norm(x, g1_ref[...], be1_ref[...])
        # feed-forward (Linear -> ReLU -> Linear); dropout == identity (eval)
        h1 = jnp.maximum(
            jnp.dot(x2.astype(bf16), w1_ref[...], preferred_element_type=f32)
            + b1_ref[...], 0.0)
        ff = jnp.dot(h1.astype(bf16), w2_ref[...],
                     preferred_element_type=f32) + b2_ref[...]
        # residual + norm2 -> carry for the next layer
        x_ref[...] = layer_norm(x + ff, g2_ref[...], be2_ref[...])

    return kernel


def transformer_stack(q2d, k2d, v2d, bias_tiled, sp, *, nhead):
    BN, E = q2d.shape
    num_layers = sp["wq"].shape[0]
    kernel = _make_transformer_stack_kernel(BN, E, nhead)

    def const2d(a):
        return pl.BlockSpec(a.shape, lambda l: (0, 0))

    def per_layer(a):
        return pl.BlockSpec((None,) + a.shape[1:], lambda l: (l, 0, 0))

    stacked = [sp[k] for k in ("wq", "bq", "wk", "bk", "wv", "bv", "wo", "bo",
                               "w1", "b1", "w2", "b2", "g1", "be1", "g2", "be2")]
    return pl.pallas_call(
        kernel,
        out_shape=jax.ShapeDtypeStruct((BN, E), jnp.float32),
        grid=(num_layers,),
        in_specs=[const2d(q2d), const2d(k2d), const2d(v2d), const2d(bias_tiled)]
                 + [per_layer(a) for a in stacked],
        out_specs=pl.BlockSpec((BN, E), lambda l: (0, 0)),
        compiler_params=pltpu.CompilerParams(
            dimension_semantics=("arbitrary",),
            vmem_limit_bytes=_VMEM_LIMIT),
    )(q2d, k2d, v2d, bias_tiled, *stacked)


# ----------------------------------------------------------------------------
# Edge-feature kernel (reproduces compute_edge_features / calculate_iou exactly,
# including the (1,H,W) box_mask slicing quirk and the sum-over-batch overlap).
# ----------------------------------------------------------------------------
def _edge_kernel(t_ref, o_ref, x1_ref, y1_ref, x2_ref, y2_ref,
                 ov_ref, iou_ref, valid_ref, *, W):
    t = t_ref[...].astype(jnp.float32)          # (B, H*W), normalized target
    o = o_ref[...].astype(jnp.float32)          # (B, N, H*W), normalized objects
    x1 = jnp.floor(x1_ref[...])                 # int() truncation; bboxes >= 0
    y1 = jnp.floor(y1_ref[...])
    x2 = jnp.floor(x2_ref[...])
    y2 = jnp.floor(y2_ref[...])

    P = t.shape[-1]
    pid = lax.broadcasted_iota(jnp.int32, (1, 1, P), 2)
    h_idx = (pid // W).astype(jnp.float32)      # row index of each flat pixel

    # box_mask = zeros((1,H,W)); box_mask[y1:y2, x1:x2] = 1  (dim0 has size 1)
    dim0 = jnp.logical_and(y1 <= 0.0, y2 >= 1.0).astype(jnp.float32)      # (B, N)
    hmask = jnp.logical_and(h_idx >= x1[..., None],
                            h_idx < x2[..., None]).astype(jnp.float32)    # (B, N, P)
    boxmask = dim0[..., None] * hmask

    box_sum = jnp.sum(boxmask, axis=-1)                                   # (B, N)
    inter = jnp.sum(boxmask * t[:, None, :], axis=-1)                     # (B, N)
    t_sum = jnp.sum(t, axis=-1)[:, None]                                  # (B, 1)
    union = box_sum + t_sum - inter
    iou = inter / (union + 1e-8)

    # target_overlap sums over ALL batches, faithfully matching the torch code.
    t_all = jnp.sum(t, axis=0)                                            # (P,)
    overlap = jnp.sum(o * t_all[None, None, :], axis=-1)                  # (B, N)

    valid = jnp.sum(o, axis=-1) > 0.0                                     # (B, N)
    ov_ref[...] = jnp.where(valid, overlap, 0.0).astype(ov_ref.dtype)
    iou_ref[...] = jnp.where(valid, iou, 0.0).astype(iou_ref.dtype)
    valid_ref[...] = valid.astype(jnp.int32)


def edge_features(t2, o2, x1, y1, x2, y2, W):
    B, N = x1.shape
    return pl.pallas_call(
        functools.partial(_edge_kernel, W=W),
        out_shape=(jax.ShapeDtypeStruct((B, N), jnp.float32),
                   jax.ShapeDtypeStruct((B, N), jnp.float32),
                   jax.ShapeDtypeStruct((B, N), jnp.int32)),
        compiler_params=pltpu.CompilerParams(vmem_limit_bytes=_VMEM_LIMIT),
    )(t2, o2, x1, y1, x2, y2)


# ----------------------------------------------------------------------------
# Parameter init (deterministic, synthetic); weights stored bf16, biases/LN f32.
# ----------------------------------------------------------------------------
def _init_linear(key, in_dim, out_dim, dtype=jnp.bfloat16):
    k1, k2 = jax.random.split(key)
    bound = 1.0 / math.sqrt(in_dim)
    w = jax.random.uniform(k1, (out_dim, in_dim), jnp.float32, -bound, bound)
    b = jax.random.uniform(k2, (1, out_dim), jnp.float32, -bound, bound)
    return w.T.astype(dtype), b      # pre-transposed (in, out)


def _init_layernorm(dim):
    return jnp.ones((1, dim), jnp.float32), jnp.zeros((1, dim), jnp.float32)


def init_params(key, *, D, N, E, num_layers, nhead, H, W):
    keys = iter(jax.random.split(key, 64))
    p = {}
    HW = H * W
    # resnet18 backbone stub.
    # TODO(synk): real pretrained resnet18 conv stack not ported.
    # The torch code repeats the 1-channel mask 3x along channels; for a linear
    # stub x_tiled @ W == x @ (W0 + W1 + W2), so the repeat is folded into W.
    w_bb1, b_bb1 = _init_linear(next(keys), 3 * HW, 512)
    w_bb1 = (w_bb1[:HW].astype(jnp.float32) + w_bb1[HW:2 * HW].astype(jnp.float32)
             + w_bb1[2 * HW:].astype(jnp.float32)).astype(jnp.bfloat16)
    p["bb_l1"] = (w_bb1, b_bb1)
    p["bb_fc"] = _init_linear(next(keys), 512, D)
    # object_rel_fc
    p["rel_l1"] = _init_linear(next(keys), N * 2, D); p["rel_ln1"] = _init_layernorm(D)
    p["rel_l2"] = _init_linear(next(keys), D, N * E)
    # W_t
    p["wt_l1"] = _init_linear(next(keys), D, 2 * D); p["wt_ln1"] = _init_layernorm(2 * D)
    p["wt_l2"] = _init_linear(next(keys), 2 * D, D); p["wt_ln2"] = _init_layernorm(D)
    p["wt_l3"] = _init_linear(next(keys), D, N * E)
    # W_o
    p["wo_l1"] = _init_linear(next(keys), N * D, 2 * D); p["wo_ln1"] = _init_layernorm(2 * D)
    p["wo_l2"] = _init_linear(next(keys), 2 * D, D); p["wo_ln2"] = _init_layernorm(D)
    p["wo_l3"] = _init_linear(next(keys), D, N * E)
    # output_projection: op_l1's weight is split into the [x | spatial_embedding]
    # K-blocks so the torch cat(..., dim=-1) never has to be materialized.
    w_op1, b_op1 = _init_linear(next(keys), N * D, D)
    w3 = w_op1.reshape(N, D, D)
    p["op_l1x"] = w3[:, :E, :].reshape(N * E, D)
    p["op_l1s"] = w3[:, E:, :].reshape(N * E, D)
    p["op_b1"] = b_op1
    p["op_ln1"] = _init_layernorm(D)
    p["op_l2"] = _init_linear(next(keys), D, 2 * D); p["op_ln2"] = _init_layernorm(2 * D)
    p["op_l3"] = _init_linear(next(keys), 2 * D, D // 2); p["op_ln3"] = _init_layernorm(D // 2)
    p["op_l4"] = _init_linear(next(keys), D // 2, N)
    # transformer layers on E = hidden_dim // 2; attention scale folded into W_q.
    # All per-layer weights are STACKED on a leading layer axis so the whole stack
    # runs as one pallas_call with a layer grid (weights prefetched per layer).
    scale = 1.0 / math.sqrt(E // nhead)
    names = ("wq", "bq", "wk", "bk", "wv", "bv", "wo", "bo",
             "w1", "b1", "w2", "b2", "g1", "be1", "g2", "be2")
    acc = {n: [] for n in names}
    for _ in range(num_layers):
        wq, bq = _init_linear(next(keys), E, E)
        acc["wq"].append((wq.astype(jnp.float32) * scale).astype(jnp.bfloat16))
        acc["bq"].append(bq * scale)
        wk, bk = _init_linear(next(keys), E, E); acc["wk"].append(wk); acc["bk"].append(bk)
        wv, bv = _init_linear(next(keys), E, E); acc["wv"].append(wv); acc["bv"].append(bv)
        wo, bo = _init_linear(next(keys), E, E); acc["wo"].append(wo); acc["bo"].append(bo)
        w1, b1 = _init_linear(next(keys), E, 4 * E); acc["w1"].append(w1); acc["b1"].append(b1)
        w2, b2 = _init_linear(next(keys), 4 * E, E); acc["w2"].append(w2); acc["b2"].append(b2)
        g1, be1 = _init_layernorm(E); acc["g1"].append(g1); acc["be1"].append(be1)
        g2, be2 = _init_layernorm(E); acc["g2"].append(g2); acc["be2"].append(be2)
    p["stack"] = {n: jnp.stack(v, axis=0) for n, v in acc.items()}
    return p


# ----------------------------------------------------------------------------
# Forward pass
# ----------------------------------------------------------------------------
def spatial_encoder_forward(params, target_mask, object_masks, bboxes, *, nhead):
    B, N, C, H, W = object_masks.shape
    D = params["bb_fc"][0].shape[1]
    E = D // 2
    BN = B * N
    f32 = jnp.float32

    # transforms.Normalize(mean=0.5, std=0.5)
    t = (target_mask.astype(f32) - 0.5) / 0.5                 # (B, 1, H, W)
    o = (object_masks.astype(f32) - 0.5) / 0.5                 # (B, N, 1, H, W)

    # --- backbone (linear stub; 3x channel repeat folded into the weight) ---
    # K (pixel) axis is the large one: stream it through an "arbitrary" grid.
    pix = jnp.concatenate([t.reshape(B, C * H * W),
                           o.reshape(B * N, C * H * W)], axis=0)      # (B+B*N, HW)
    rows = B + B * N
    pad_rows = (-rows) % 8
    if pad_rows:
        pix = jnp.pad(pix, ((0, pad_rows), (0, 0)))
    feats = fused_mlp(
        pix,
        [{"ws": [params["bb_l1"][0]], "b": params["bb_l1"][1], "ln": None, "relu": True},
         {"ws": [params["bb_fc"][0]], "b": params["bb_fc"][1], "ln": None, "relu": False}],
        D, k_tile=128)
    target_feat = feats[:B]                                           # (B, D)
    object_feats = feats[B:B + BN].reshape(B, N * D)                  # (B, N*D)

    # --- edge features + valid mask (single kernel) ---
    t2 = t.reshape(B, H * W)
    o2 = o.reshape(B, N, H * W)
    overlap, iou, valid_i = edge_features(
        t2, o2, bboxes[..., 0], bboxes[..., 1], bboxes[..., 2], bboxes[..., 3], W)
    valid_mask = valid_i.astype(bool)
    attention_mask = jnp.logical_not(valid_mask)                      # True == padded
    objects_rel = jnp.stack([overlap, iou], axis=-1).reshape(B, N * 2)

    # Additive attention bias: block-diagonal over batches + key-padding mask,
    # finite -1e9 (no NaN for fully-masked rows); pre-tiled per head so the
    # kernel's stacked (nhead*BN, BN) softmax adds it directly.
    same_batch = jnp.repeat(jnp.repeat(jnp.eye(B, dtype=bool), N, axis=0), N, axis=1)
    key_padded = jnp.tile(attention_mask.reshape(1, BN), (BN, 1))
    attn_bias = jnp.where(same_batch & ~key_padded, 0.0, -1e9).astype(f32)
    attn_bias_tiled = jnp.tile(attn_bias, (nhead, 1))                 # (nhead*BN, BN)

    def stage(wb, ln=None, relu=False):
        return {"ws": [wb[0]], "b": wb[1], "ln": ln, "relu": relu}

    # --- spatial embedding (object_rel_fc): one fused kernel ---
    spatial_embedding = fused_mlp(
        objects_rel,
        [stage(params["rel_l1"], params["rel_ln1"], relu=True),
         stage(params["rel_l2"])],
        N * E)                                                        # (B, N*E)

    # --- query (W_t): one fused kernel ---
    query = fused_mlp(
        target_feat,
        [stage(params["wt_l1"], params["wt_ln1"], relu=True),
         stage(params["wt_l2"], params["wt_ln2"], relu=True),
         stage(params["wt_l3"])],
        N * E)                                                        # (B, N*E)

    # --- key (W_o): one fused kernel ---
    # TODO(synk): at real hidden_dim=1024 pass k_tile here too (wo_l1 is 32 MiB).
    key = fused_mlp(
        object_feats,
        [stage(params["wo_l1"], params["wo_ln1"], relu=True),
         stage(params["wo_l2"], params["wo_ln2"], relu=True),
         stage(params["wo_l3"])],
        N * E)                                                        # (B, N*E)

    # --- all spatial transformer layers: ONE fused pallas_call (layer grid) ---
    q2d = query.reshape(BN, E)
    k2d = key.reshape(BN, E)
    v2d = spatial_embedding.reshape(BN, E)
    x2d = transformer_stack(q2d, k2d, v2d, attn_bias_tiled, params["stack"],
                            nhead=nhead)                              # (BN, E)

    # --- output projection: fused 4-stage MLP; cat([x, spatial_embedding])
    #     folded into two K-blocks of the first weight ---
    logits = fused_mlp(
        [x2d.reshape(B, N * E), spatial_embedding],
        [{"ws": [params["op_l1x"], params["op_l1s"]], "b": params["op_b1"],
          "ln": params["op_ln1"], "relu": True},
         stage(params["op_l2"], params["op_ln2"], relu=True),
         stage(params["op_l3"], params["op_ln3"], relu=True),
         stage(params["op_l4"])],
        N)                                                            # (B, N)
    logits = jnp.where(attention_mask, -10000.0, logits)
    return logits, valid_mask


# ----------------------------------------------------------------------------
# Main
# ----------------------------------------------------------------------------
if __name__ == "__main__":
    B, N, C, H, W = 2, 8, 1, 16, 16       # N == args.num_patches
    D = 64                                 # hidden_dim (1024 in the original)
    E = D // 2
    NHEAD = 4
    NUM_LAYERS = 4

    root = jax.random.PRNGKey(0)
    kp, kt, ko1, ko2, kb1, kb2, kb3 = jax.random.split(root, 7)

    params = init_params(kp, D=D, N=N, E=E, num_layers=NUM_LAYERS,
                         nhead=NHEAD, H=H, W=W)

    target_mask = jax.random.uniform(kt, (B, 1, H, W), jnp.float32)
    # first half of the objects are "present" (valid), second half near-empty
    obj_hi = jax.random.uniform(ko1, (B, N // 2, C, H, W), jnp.float32, 0.6, 1.0)
    obj_lo = jax.random.uniform(ko2, (B, N - N // 2, C, H, W), jnp.float32, 0.0, 0.3)
    object_masks = jnp.concatenate([obj_hi, obj_lo], axis=1)

    x1 = jax.random.uniform(kb1, (B, N), jnp.float32, 0.0, W / 2)
    x2 = x1 + jax.random.uniform(kb2, (B, N), jnp.float32, 2.0, W / 2)
    y1 = jnp.tile(jnp.array([0.0, 2.0] * (N // 2), jnp.float32), (B, 1))
    y2 = y1 + jax.random.uniform(kb3, (B, N), jnp.float32, 2.0, H / 2)
    bboxes = jnp.stack([x1, y1, x2, y2], axis=-1)

    logits, valid_mask = spatial_encoder_forward(
        params, target_mask, object_masks, bboxes, nhead=NHEAD)
    jax.block_until_ready((logits, valid_mask))

    assert logits.shape == (B, N) and valid_mask.shape == (B, N)
    assert bool(jnp.all(jnp.isfinite(logits)))
    print("KERNEL_OK")
</pallas_src>

<mosaic_0001>
module attributes {stable_mosaic.version = 11 : i64} {
  func.func @kernel(%arg0: i32, %arg1: memref<24x128xf32, #tpu.memory_space<vmem>>, %arg2: memref<128x512xbf16, #tpu.memory_space<vmem>>, %arg3: memref<1x512xf32, #tpu.memory_space<vmem>>, %arg4: memref<512x64xbf16, #tpu.memory_space<vmem>>, %arg5: memref<1x64xf32, #tpu.memory_space<vmem>>, %arg6: memref<24x64xf32, #tpu.memory_space<vmem>>, %arg7: memref<24x512xf32, #tpu.memory_space<vmem>>) attributes {dimension_semantics = [#tpu.dimension_semantics<arbitrary>], iteration_bounds = array<i64: 2>, scalar_prefetch = 0 : i64, scratch_operands = 1 : i64, tpu.core_type = #tpu.core_type<tc>, window_params = [{transform_indices = @transform_0, window_bounds = array<i64: 24, 128>}, {transform_indices = @transform_1, window_bounds = array<i64: 128, 512>}, {pipeline_mode = #tpu.pipeline_mode<synchronous>, transform_indices = @transform_2, window_bounds = array<i64: 1, 512>}, {pipeline_mode = #tpu.pipeline_mode<synchronous>, transform_indices = @transform_3, window_bounds = array<i64: 512, 64>}, {pipeline_mode = #tpu.pipeline_mode<synchronous>, transform_indices = @transform_4, window_bounds = array<i64: 1, 64>}, {pipeline_mode = #tpu.pipeline_mode<synchronous>, transform_indices = @transform_5, window_bounds = array<i64: 24, 64>}]} {
    %c0_i32 = arith.constant 0 : i32
    %0 = arith.cmpi eq, %arg0, %c0_i32 : i32
    %1 = arith.extui %0 : i1 to i32
    %c0_i32_0 = arith.constant 0 : i32
    %2 = arith.cmpi ne, %1, %c0_i32_0 : i32
    scf.if %2 {
      %cst_9 = arith.constant 0.000000e+00 : f32
      %13 = vector.broadcast %cst_9 : f32 to vector<24x512xf32>
      %c0_10 = arith.constant 0 : index
      %c0_11 = arith.constant 0 : index
      %14 = vector.load %arg7[%c0_10, %c0_11] : memref<24x512xf32, #tpu.memory_space<vmem>>, vector<24x512xf32>
      tpu.vector_store %arg7[%c0_10, %c0_11], %13 {strides = array<i32>} : memref<24x512xf32, #tpu.memory_space<vmem>>, vector<24x512xf32>,
    } else {
    }
    %c0 = arith.constant 0 : index
    %c0_1 = arith.constant 0 : index
    %3 = vector.load %arg1[%c0, %c0_1] : memref<24x128xf32, #tpu.memory_space<vmem>>, vector<24x128xf32>
    %c0_2 = arith.constant 0 : index
    %c0_3 = arith.constant 0 : index
    %4 = vector.load %arg2[%c0_2, %c0_3] : memref<128x512xbf16, #tpu.memory_space<vmem>>, vector<128x512xbf16>
    %c0_4 = arith.constant 0 : index
    %c0_5 = arith.constant 0 : index
    %5 = vector.load %arg7[%c0_4, %c0_5] : memref<24x512xf32, #tpu.memory_space<vmem>>, vector<24x512xf32>
    %6 = arith.truncf %3 : vector<24x128xf32> to vector<24x128xbf16>
    %cst = arith.constant dense<0.000000e+00> : vector<24x512xf32>
    %7 = tpu.matmul %6, %4, %cst {dimension_numbers = #tpu.dot_dimension_numbers<[1], [0], [0], [1], [0, 0, 1, 1], [], []>} : vector<24x128xbf16>, vector<128x512xbf16>, vector<24x512xf32> -> vector<24x512xf32>
    %8 = arith.addf %5, %7 : vector<24x512xf32>
    %c0_6 = arith.constant 0 : index
    %c0_7 = arith.constant 0 : index
    %9 = vector.load %arg7[%c0_6, %c0_7] : memref<24x512xf32, #tpu.memory_space<vmem>>, vector<24x512xf32>
    tpu.vector_store %arg7[%c0_6, %c0_7], %8 {strides = array<i32>} : memref<24x512xf32, #tpu.memory_space<vmem>>, vector<24x512xf32>,
    %c1_i32 = arith.constant 1 : i32
    %10 = arith.cmpi eq, %arg0, %c1_i32 : i32
    %11 = arith.extui %10 : i1 to i32
    %c0_i32_8 = arith.constant 0 : i32
    %12 = arith.cmpi ne, %11, %c0_i32_8 : i32
    scf.if %12 {
      %c0_9 = arith.constant 0 : index
      %c0_10 = arith.constant 0 : index
      %13 = vector.load %arg7[%c0_9, %c0_10] : memref<24x512xf32, #tpu.memory_space<vmem>>, vector<24x512xf32>
      %c0_11 = arith.constant 0 : index
      %c0_12 = arith.constant 0 : index
      %14 = vector.load %arg3[%c0_11, %c0_12] : memref<1x512xf32, #tpu.memory_space<vmem>>, vector<1x512xf32>
      %15 = vector.broadcast %14 : vector<1x512xf32> to vector<24x512xf32>
      %16 = arith.addf %13, %15 : vector<24x512xf32>
      %cst_13 = arith.constant 0.000000e+00 : f32
      %17 = vector.broadcast %cst_13 : f32 to vector<24x512xf32>
      %18 = arith.maximumf %16, %17 : vector<24x512xf32>
      %c0_14 = arith.constant 0 : index
      %c0_15 = arith.constant 0 : index
      %19 = vector.load %arg4[%c0_14, %c0_15] : memref<512x64xbf16, #tpu.memory_space<vmem>>, vector<512x64xbf16>
      %20 = arith.truncf %18 : vector<24x512xf32> to vector<24x512xbf16>
      %cst_16 = arith.constant dense<0.000000e+00> : vector<24x64xf32>
      %21 = tpu.matmul %20, %19, %cst_16 {dimension_numbers = #tpu.dot_dimension_numbers<[1], [0], [0], [1], [0, 0, 1, 1], [], []>} : vector<24x512xbf16>, vector<512x64xbf16>, vector<24x64xf32> -> vector<24x64xf32>
      %c0_17 = arith.constant 0 : index
      %c0_18 = arith.constant 0 : index
      %22 = vector.load %arg5[%c0_17, %c0_18] : memref<1x64xf32, #tpu.memory_space<vmem>>, vector<1x64xf32>
      %23 = vector.broadcast %22 : vector<1x64xf32> to vector<24x64xf32>
      %24 = arith.addf %21, %23 : vector<24x64xf32>
      %c0_19 = arith.constant 0 : index
      %c0_20 = arith.constant 0 : index
      %25 = vector.load %arg6[%c0_19, %c0_20] : memref<24x64xf32, #tpu.memory_space<vmem>>, vector<24x64xf32>
      tpu.vector_store %arg6[%c0_19, %c0_20], %24 {strides = array<i32>} : memref<24x64xf32, #tpu.memory_space<vmem>>, vector<24x64xf32>,
    } else {
    }
    return
  }
  func.func @transform_0(%arg0: i32) -> (i32, i32) {
    %c0_i32 = arith.constant 0 : i32
    %c0_i32_0 = arith.constant 0 : i32
    return %c0_i32, %arg0 : i32, i32
  }
  func.func @transform_1(%arg0: i32) -> (i32, i32) {
    %c0_i32 = arith.constant 0 : i32
    %c0_i32_0 = arith.constant 0 : i32
    return %arg0, %c0_i32 : i32, i32
  }
  func.func @transform_2(%arg0: i32) -> (i32, i32) {
    %c0_i32 = arith.constant 0 : i32
    %c0_i32_0 = arith.constant 0 : i32
    %c0_i32_1 = arith.constant 0 : i32
    return %c0_i32, %c0_i32_0 : i32, i32
  }
  func.func @transform_3(%arg0: i32) -> (i32, i32) {
    %c0_i32 = arith.constant 0 : i32
    %c0_i32_0 = arith.constant 0 : i32
    %c0_i32_1 = arith.constant 0 : i32
    return %c0_i32, %c0_i32_0 : i32, i32
  }
  func.func @transform_4(%arg0: i32) -> (i32, i32) {
    %c0_i32 = arith.constant 0 : i32
    %c0_i32_0 = arith.constant 0 : i32
    %c0_i32_1 = arith.constant 0 : i32
    return %c0_i32, %c0_i32_0 : i32, i32
  }
  func.func @transform_5(%arg0: i32) -> (i32, i32) {
    %c0_i32 = arith.constant 0 : i32
    %c0_i32_0 = arith.constant 0 : i32
    %c0_i32_1 = arith.constant 0 : i32
    return %c0_i32, %c0_i32_0 : i32, i32
  }
}

</mosaic_0001>

<llo_original>
// kernel: tpu_custom_call.1
$region0: #{tpu_custom_call.1}
  #allocation0 [shape = 'u32[]', space=smem, size = 0x4, offset = 0x4, fixed_abs, tag = 'smem constant byte address 0x4 - core index']
  #allocation1 [shape = 'u32[144,128]{1,0:T(1,128)}', space=vmem, size = 0x12000, scoped, tag = 'internal scratch']
  #allocation2 [shape = 'f32[24,512]{1,0:T(8,128)}', space=vmem, size = 0xc000, scoped, tag = 'scratch operand']
  %s0 = inlined_call_operand.hbm [shape: f32[24,256], index: 0, kind: input, shape index: {}]
  %s1 = inlined_call_operand.hbm [shape: bf16[256,512], index: 1, kind: input, shape index: {}]
  %s2 = inlined_call_operand.hbm [shape: f32[1,512], index: 2, kind: input, shape index: {}]
  %s3 = inlined_call_operand.hbm [shape: bf16[512,64], index: 3, kind: input, shape index: {}]
  %s4 = inlined_call_operand.hbm [shape: f32[1,64], index: 4, kind: input, shape index: {}]
  %s5 = inlined_call_operand.hbm [shape: f32[24,64], index: 5, kind: output, shape index: {}]
  %s6 = sld [smem:[#allocation0]]
  $region81: #{tpu_custom_call.1} parent=0
    _
  %s8 = ssub.s32 1, %s6
  %s9 = scalar_select 0, %s8, %s6
  $region1: #{tpu_custom_call.1} parent=0
    #allocation3 [shape = 'u8[24576]{0}', space=vmem, size = 0x6000, scoped, tag = 'input window, operand 0']
    #allocation4 [shape = 's32[2]{0}', space=sflag, size = 0x8, scoped, tag = 'scoped memory for tpu_custom_call.1']
    #allocation5 [shape = 's32[2]{0}', space=sflag, size = 0x8, scoped, tag = 'scoped memory for tpu_custom_call.1']
    #allocation6 [shape = 'u8[262144]{0}', space=vmem, size = 0x40000, scoped, tag = 'input window, operand 1']
    #allocation7 [shape = 's32[2]{0}', space=sflag, size = 0x8, scoped, tag = 'scoped memory for tpu_custom_call.1']
    #allocation8 [shape = 'u8[2048]{0}', space=vmem, size = 0x800, scoped, tag = 'input window, operand 2, single buffered']
    #allocation9 [shape = 'u8[131072]{0}', space=vmem, size = 0x20000, scoped, tag = 'input window, operand 3, single buffered']
    #allocation10 [shape = 's32[1]{0}', space=sflag, size = 0x4, scoped, tag = 'scoped memory for tpu_custom_call.1']
    #allocation11 [shape = 'u8[512]{0}', space=vmem, size = 0x400, scoped, tag = 'input window, operand 4, single buffered']
    #allocation12 [shape = 'u8[12288]{0}', space=vmem, size = 0x3000, scoped, tag = 'output window, operand 0, single buffered']
    %10 = vsyncpa [#allocation4], 0
    %s11 = scalar_lea.sflag [#allocation4], 1
    %12 = vsyncpa %s11, 0
    %13 = vsyncpa [#allocation7], 0
    %s14 = scalar_lea.sflag [#allocation7], 1
    %15 = vsyncpa %s14, 0
    %16 = vsyncpa [#allocation10], 0
    %17 = vsyncpa [#allocation5], 0
    loop: start=0, step=1, limit=4
    $region2: #{tpu_custom_call.1} parent=1 // loop_pre_header
      _
    $region3: #{tpu_custom_call.1} parent=1 // loop_header
      %s19 = sphi 0, %s23
      %p20 = scmp.ge.s32.totalorder %s19, 4
      %s29 = sphi 0, %s31
      %s32 = sphi 0, %s29
      %s33 = sphi 0, %s32
      %s49 = sphi 0, %s33
      %s55 = sphi 0, %s57
      %s58 = sphi 0, %s55
      %s59 = sphi 0, %s58
      %s75 = sphi 0, %s59
      %s79 = sphi 0, %s79
      %s81 = sphi 0, %s79
      %s82 = sphi 0, %s81
      %s96 = sphi 0, %s82
      %s100 = sphi 0, %s100
      %s102 = sphi 0, %s100
      %s103 = sphi 0, %s102
      %s117 = sphi 0, %s103
      %s121 = sphi 0, %s121
      %s123 = sphi 0, %s121
      %s124 = sphi 0, %s123
      %s138 = sphi 0, %s124
      %s142 = sphi 0, %s142
      %s144 = sphi 0, %s142
      %s145 = sphi 0, %s144
      %s159 = sphi 0, %s145
    $region4: #{tpu_custom_call.1} parent=1 // loop_header_branch
      %22 = sbr.rel (%p20) target = $region8
    $region5: #{tpu_custom_call.1} parent=1 // loop_body
      %s24 = ssub.s32 %s19, 1
      %s25 = ssub.s32 %s19, 2
      %s26 = sadd.s32 %s19, 1
      %s27 = ssub.s32 %s19, %s26
      %p28 = scmp.eq.s32.totalorder %s27, 0
      %s30 = sadd.s32 %s29, 1
      %s31 = scalar_select %p28, %s29, %s30
      %p34 = pneg %p28
      %p35 = scmp.eq.s32.totalorder %s19, 1
      %p36 = por %p34, %p35
      %p37 = scmp.ne.s32.totalorder %s29, %s32
      %p38 = scmp.eq.s32.totalorder %s19, 0
      %p39 = por %p37, %p38
      %p40 = scmp.ne.s32.totalorder %s29, %s32
      %p41 = scmp.eq.s32.totalorder %s24, 1
      %p42 = por %p40, %p41
      %p43 = scmp.ne.s32.totalorder %s32, %s33
      %p44 = scmp.eq.s32.totalorder %s24, 0
      %p45 = por %p43, %p44
      %p46 = scmp.ne.s32.totalorder %s32, %s33
      %p47 = scmp.eq.s32.totalorder %s25, 1
      %p48 = por %p46, %p47
      %p50 = scmp.ne.s32.totalorder %s33, %s49
      %p51 = scmp.eq.s32.totalorder %s25, 0
      %p52 = por %p50, %p51
      %s53 = ssub.s32 %s19, %s26
      %p54 = scmp.eq.s32.totalorder %s53, 0
      %s56 = sadd.s32 %s55, 1
      %s57 = scalar_select %p54, %s55, %s56
      %p60 = pneg %p54
      %p61 = scmp.eq.s32.totalorder %s19, 1
      %p62 = por %p60, %p61
      %p63 = scmp.ne.s32.totalorder %s55, %s58
      %p64 = scmp.eq.s32.totalorder %s19, 0
      %p65 = por %p63, %p64
      %p66 = scmp.ne.s32.totalorder %s55, %s58
      %p67 = scmp.eq.s32.totalorder %s24, 1
      %p68 = por %p66, %p67
      %p69 = scmp.ne.s32.totalorder %s58, %s59
      %p70 = scmp.eq.s32.totalorder %s24, 0
      %p71 = por %p69, %p70
      %p72 = scmp.ne.s32.totalorder %s58, %s59
      %p73 = scmp.eq.s32.totalorder %s25, 1
      %p74 = por %p72, %p73
      %p76 = scmp.ne.s32.totalorder %s59, %s75
      %p77 = scmp.eq.s32.totalorder %s25, 0
      %p78 = por %p76, %p77
      %s80 = sadd.s32 %s79, 1
      %p83 = scmp.eq.s32.totalorder %s19, 1
      %p84 = scmp.ne.s32.totalorder %s79, %s81
      %p85 = scmp.eq.s32.totalorder %s19, 0
      %p86 = por %p84, %p85
      %p87 = scmp.ne.s32.totalorder %s79, %s81
      %p88 = scmp.eq.s32.totalorder %s24, 1
      %p89 = por %p87, %p88
      %p90 = scmp.ne.s32.totalorder %s81, %s82
      %p91 = scmp.eq.s32.totalorder %s24, 0
      %p92 = por %p90, %p91
      %p93 = scmp.ne.s32.totalorder %s81, %s82
      %p94 = scmp.eq.s32.totalorder %s25, 1
      %p95 = por %p93, %p94
      %p97 = scmp.ne.s32.totalorder %s82, %s96
      %p98 = scmp.eq.s32.totalorder %s25, 0
      %p99 = por %p97, %p98
      %s101 = sadd.s32 %s100, 1
      %p104 = scmp.eq.s32.totalorder %s19, 1
      %p105 = scmp.ne.s32.totalorder %s100, %s102
      %p106 = scmp.eq.s32.totalorder %s19, 0
      %p107 = por %p105, %p106
      %p108 = scmp.ne.s32.totalorder %s100, %s102
      %p109 = scmp.eq.s32.totalorder %s24, 1
      %p110 = por %p108, %p109
      %p111 = scmp.ne.s32.totalorder %s102, %s103
      %p112 = scmp.eq.s32.totalorder %s24, 0
      %p113 = por %p111, %p112
      %p114 = scmp.ne.s32.totalorder %s102, %s103
      %p115 = scmp.eq.s32.totalorder %s25, 1
      %p116 = por %p114, %p115
      %p118 = scmp.ne.s32.totalorder %s103, %s117
      %p119 = scmp.eq.s32.totalorder %s25, 0
      %p120 = por %p118, %p119
      %s122 = sadd.s32 %s121, 1
      %p125 = scmp.eq.s32.totalorder %s19, 1
      %p126 = scmp.ne.s32.totalorder %s121, %s123
      %p127 = scmp.eq.s32.totalorder %s19, 0
      %p128 = por %p126, %p127
      %p129 = scmp.ne.s32.totalorder %s121, %s123
      %p130 = scmp.eq.s32.totalorder %s24, 1
      %p131 = por %p129, %p130
      %p132 = scmp.ne.s32.totalorder %s123, %s124
      %p133 = scmp.eq.s32.totalorder %s24, 0
      %p134 = por %p132, %p133
      %p135 = scmp.ne.s32.totalorder %s123, %s124
      %p136 = scmp.eq.s32.totalorder %s25, 1
      %p137 = por %p135, %p136
      %p139 = scmp.ne.s32.totalorder %s124, %s138
      %p140 = scmp.eq.s32.totalorder %s25, 0
      %p141 = por %p139, %p140
      %s143 = sadd.s32 %s142, 1
      %p146 = scmp.eq.s32.totalorder %s19, 1
      %p147 = scmp.ne.s32.totalorder %s142, %s144
      %p148 = scmp.eq.s32.totalorder %s19, 0
      %p149 = por %p147, %p148
      %p150 = scmp.ne.s32.totalorder %s142, %s144
      %p151 = scmp.eq.s32.totalorder %s24, 1
      %p152 = por %p150, %p151
      %p153 = scmp.ne.s32.totalorder %s144, %s145
      %p154 = scmp.eq.s32.totalorder %s24, 0
      %p155 = por %p153, %p154
      %p156 = scmp.ne.s32.totalorder %s144, %s145
      %p157 = scmp.eq.s32.totalorder %s25, 1
      %p158 = por %p156, %p157
      %p160 = scmp.ne.s32.totalorder %s145, %s159
      %p161 = scmp.eq.s32.totalorder %s25, 0
      %p162 = por %p160, %p161
      %p163 = scmp.le.s32.totalorder 1, %s19
      %p164 = scmp.lt.s32.totalorder %s19, 3
      %p165 = pnand %p163, %p164
      %p166 = pneg %p165
      // Predicated region
      $region9: #{tpu_custom_call.1} parent=5 // pred_check
        _
      $region10: #{tpu_custom_call.1} parent=5 // pred_check_branch
        %168 = sbr.rel (%p165) target = $region12
      $region11: #{tpu_custom_call.1} parent=5 // pred_region
        %s169 = ssub.s32 %s19, 1
        // Predicated region
        $region13: #{tpu_custom_call.1} parent=11 // pred_check
          %p170 = pneg %p92
        $region14: #{tpu_custom_call.1} parent=11 // pred_check_branch
          %172 = sbr.rel (%p170) target = $region16
        $region15: #{tpu_custom_call.1} parent=11 // pred_region
          %s174 = ssub.s32 64, 64
          %175 = vsyncadd [#allocation7], %s174
          %s177 = sshll.u32 [#allocation8], 4
          %s178 = int_to_ptr.vmem [resolvable:$true] %s177
          %180 = dma.hbm_to_vmem [thread:$0]  %s2, 64, %s178, [#allocation7]
        $region16: #{tpu_custom_call.1} parent=11 // pred_fallthru
          _
        // Predicated region
        $region17: #{tpu_custom_call.1} parent=11 // pred_check
          %p181 = pneg %p113
        $region18: #{tpu_custom_call.1} parent=11 // pred_check_branch
          %183 = sbr.rel (%p181) target = $region20
        $region19: #{tpu_custom_call.1} parent=11 // pred_region
          %s185 = ssub.s32 4096, 4096
          %186 = vsyncadd [#allocation10], %s185
          %s187 = sshll.u32 [#allocation9], 4
          %s188 = int_to_ptr.vmem [resolvable:$true] %s187
          %193 = dma.hbm_to_vmem [thread:$0]  %s3, 4096, %s188, [#allocation10], 64, 64, 4
        $region20: #{tpu_custom_call.1} parent=11 // pred_fallthru
          _
        // Predicated region
        $region21: #{tpu_custom_call.1} parent=11 // pred_check
          %p194 = pneg %p134
        $region22: #{tpu_custom_call.1} parent=11 // pred_check_branch
          %196 = sbr.rel (%p194) target = $region24
        $region23: #{tpu_custom_call.1} parent=11 // pred_region
          %s198 = ssub.s32 16, 16
          %199 = vsyncadd [#allocation10], %s198
          %s201 = sshll.u32 [#allocation11], 4
          %s202 = int_to_ptr.vmem [resolvable:$true] %s201
          %204 = dma.hbm_to_vmem [thread:$0]  %s4, 16, %s202, [#allocation10]
        $region24: #{tpu_custom_call.1} parent=11 // pred_fallthru
          _
      $region12: #{tpu_custom_call.1} parent=5 // pred_fallthru
        _
      %p205 = scmp.lt.s32.totalorder %s19, 2
      // Predicated region
      $region25: #{tpu_custom_call.1} parent=5 // pred_check
        %p206 = pneg %p205
      $region26: #{tpu_custom_call.1} parent=5 // pred_check_branch
        %208 = sbr.rel (%p206) target = $region28
      $region27: #{tpu_custom_call.1} parent=5 // pred_region
        // Predicated region
        $region29: #{tpu_custom_call.1} parent=27 // pred_check
          %p209 = pneg %p39
        $region30: #{tpu_custom_call.1} parent=27 // pred_check_branch
          %211 = sbr.rel (%p209) target = $region32
        $region31: #{tpu_custom_call.1} parent=27 // pred_region
          %s212 = sand.u32 %s29, 1
          %s213 = scalar_lea.sflag [#allocation4], %s212
          %s214 = sand.u32 %s29, 1
          %s215 = smul.addr %s214, 24
          %s216 = scalar_lea.vmem [#allocation3], %s215
          %s218 = ssub.s32 384, 384
          %219 = vsyncadd %s213, %s218
          %s220 = smul.addr %s19, 128
          %s221 = scalar_lea.hbm %s0, %s220
          %s222 = sshll.u32 %s216, 4
          %s223 = int_to_ptr.vmem [resolvable:$true] %s222
          %228 = dma.hbm_to_vmem [thread:$0]  %s221, 384, %s223, %s213, 256, 128, 8
        $region32: #{tpu_custom_call.1} parent=27 // pred_fallthru
          _
        // Predicated region
        $region33: #{tpu_custom_call.1} parent=27 // pred_check
          %p229 = pneg %p65
        $region34: #{tpu_custom_call.1} parent=27 // pred_check_branch
          %231 = sbr.rel (%p229) target = $region36
        $region35: #{tpu_custom_call.1} parent=27 // pred_region
          %s232 = sand.u32 %s19, 1
          %s233 = scalar_lea.sflag [#allocation7], %s232
          %s234 = sand.u32 %s55, 1
          %s235 = smul.addr %s234, 256
          %s236 = scalar_lea.vmem [#allocation6], %s235
          %s237 = smul.u32 16, %s19
          %s239 = ssub.s32 4096, 4096
          %240 = vsyncadd %s233, %s239
          %s241 = smul.addr %s237, 4
          %s242 = smul.addr %s241, 64
          %s243 = scalar_lea.hbm %s1, %s242
          %s244 = sshll.u32 %s236, 4
          %s245 = int_to_ptr.vmem [resolvable:$true] %s244
          %250 = dma.hbm_to_vmem [thread:$0]  %s243, 4096, %s245, %s233, 256, 256, 16
        $region36: #{tpu_custom_call.1} parent=27 // pred_fallthru
          _
      $region28: #{tpu_custom_call.1} parent=5 // pred_fallthru
        _
      %p251 = scmp.le.s32.totalorder 1, %s19
      %p252 = scmp.lt.s32.totalorder %s19, 3
      %p253 = pnand %p251, %p252
      %p254 = pneg %p253
      // Predicated region
      $region37: #{tpu_custom_call.1} parent=5 // pred_check
        _
      $region38: #{tpu_custom_call.1} parent=5 // pred_check_branch
        %256 = sbr.rel (%p253) target = $region40
      $region39: #{tpu_custom_call.1} parent=5 // pred_region
        %s257 = ssub.s32 %s19, 1
        %s258 = sand.u32 %s32, 1
        %s259 = scalar_lea.sflag [#allocation4], %s258
        %s260 = sand.u32 %s32, 1
        %s261 = smul.addr %s260, 24
        %s262 = scalar_lea.vmem [#allocation3], %s261
        // Predicated region
        $region41: #{tpu_custom_call.1} parent=39 // pred_check
          %p263 = pneg %p45
        $region42: #{tpu_custom_call.1} parent=39 // pred_check_branch
          %265 = sbr.rel (%p263) target = $region44
        $region43: #{tpu_custom_call.1} parent=39 // pred_region
          %266 = dma.done %s259, 384
        $region44: #{tpu_custom_call.1} parent=39 // pred_fallthru
          _
        %s267 = sand.u32 %s24, 1
        %s268 = scalar_lea.sflag [#allocation7], %s267
        %s269 = sand.u32 %s58, 1
        %s270 = smul.addr %s269, 256
        %s271 = scalar_lea.vmem [#allocation6], %s270
        // Predicated region
        $region45: #{tpu_custom_call.1} parent=39 // pred_check
          %p272 = pneg %p71
        $region46: #{tpu_custom_call.1} parent=39 // pred_check_branch
          %274 = sbr.rel (%p272) target = $region48
        $region47: #{tpu_custom_call.1} parent=39 // pred_region
          %275 = dma.done %s268, 4096
        $region48: #{tpu_custom_call.1} parent=39 // pred_fallthru
          _
        // Predicated region
        $region49: #{tpu_custom_call.1} parent=39 // pred_check
          %p276 = pneg %p92
        $region50: #{tpu_custom_call.1} parent=39 // pred_check_branch
          %278 = sbr.rel (%p276) target = $region52
        $region51: #{tpu_custom_call.1} parent=39 // pred_region
          %279 = dma.done [#allocation7], 64
        $region52: #{tpu_custom_call.1} parent=39 // pred_fallthru
          _
        // Predicated region
        $region53: #{tpu_custom_call.1} parent=39 // pred_check
          %p280 = pneg %p113
        $region54: #{tpu_custom_call.1} parent=39 // pred_check_branch
          %282 = sbr.rel (%p280) target = $region56
        $region55: #{tpu_custom_call.1} parent=39 // pred_region
          %283 = dma.done [#allocation10], 4096
        $region56: #{tpu_custom_call.1} parent=39 // pred_fallthru
          _
        // Predicated region
        $region57: #{tpu_custom_call.1} parent=39 // pred_check
          %p284 = pneg %p134
        $region58: #{tpu_custom_call.1} parent=39 // pred_check_branch
          %286 = sbr.rel (%p284) target = $region60
        $region59: #{tpu_custom_call.1} parent=39 // pred_region
          %287 = dma.done [#allocation10], 16
        $region60: #{tpu_custom_call.1} parent=39 // pred_fallthru
          _
        %s288 = sand.u32 %s32, 1
        %s289 = scalar_lea.sflag [#allocation4], %s288
        %s290 = sand.u32 %s32, 1
        %s291 = smul.addr %s290, 24
        %s292 = scalar_lea.vmem [#allocation3], %s291
        %p293 = pneg %p45
        %p294 = pneg %p42
        %s295 = sand.u32 %s24, 1
        %s296 = scalar_lea.sflag [#allocation7], %s295
        %s297 = sand.u32 %s58, 1
        %s298 = smul.addr %s297, 256
        %s299 = scalar_lea.vmem [#allocation6], %s298
        %p300 = pneg %p71
        %p301 = pneg %p68
        %p302 = pneg %p92
        %p303 = pneg %p89
        %p304 = pneg %p113
        %p305 = pneg %p110
        %p306 = pneg %p134
        %p307 = pneg %p131
        %p308 = pneg %p155
        %p309 = pneg %p152
        %s310 = smul.u32 16, %s24
        %p312 = scmp.eq.s32.totalorder %s24, 0
        // Predicated region
        $region61: #{tpu_custom_call.1} parent=39 // pred_check
          %p313 = pneg %p312
        $region62: #{tpu_custom_call.1} parent=39 // pred_check_branch
          %315 = sbr.rel (%p313) target = $region64
        $region63: #{tpu_custom_call.1} parent=39 // pred_region
          %316 = vst [vmem:[#allocation2] sm:$0xff] 0.0
          %317 = vst [vmem:[#allocation2 + $0x8] sm:$0xff] 0.0
          %318 = vst [vmem:[#allocation2 + $0x10] sm:$0xff] 0.0
          %319 = vst [vmem:[#allocation2 + $0x18] sm:$0xff] 0.0
          %320 = vst [vmem:[#allocation2 + $0x20] sm:$0xff] 0.0
          %321 = vst [vmem:[#allocation2 + $0x28] sm:$0xff] 0.0
          %322 = vst [vmem:[#allocation2 + $0x30] sm:$0xff] 0.0
          %323 = vst [vmem:[#allocation2 + $0x38] sm:$0xff] 0.0
          %324 = vst [vmem:[#allocation2 + $0x40] sm:$0xff] 0.0
          %325 = vst [vmem:[#allocation2 + $0x48] sm:$0xff] 0.0
          %326 = vst [vmem:[#allocation2 + $0x50] sm:$0xff] 0.0
          %327 = vst [vmem:[#allocation2 + $0x58] sm:$0xff] 0.0
        $region64: #{tpu_custom_call.1} parent=39 // pred_fallthru
          _
        %v328 = vld [vmem:[%s262] sm:$0xff]
        %v329 = vld [vmem:[%s262 + $0x8] sm:$0xff]
        %v330 = vld [vmem:[%s262 + $0x10] sm:$0xff]
        %v331 = vld [vmem:[%s271] sm:$0xff]
        %v332 = vld [vmem:[%s271 + $0x8] sm:$0xff]
        %v333 = vld [vmem:[%s271 + $0x10] sm:$0xff]
        %v334 = vld [vmem:[%s271 + $0x18] sm:$0xff]
        %v335 = vld [vmem:[%s271 + $0x20] sm:$0xff]
        %v336 = vld [vmem:[%s271 + $0x28] sm:$0xff]
        %v337 = vld [vmem:[%s271 + $0x30] sm:$0xff]
        %v338 = vld [vmem:[%s271 + $0x38] sm:$0xff]
        %v339 = vld [vmem:[%s271 + $0x40] sm:$0xff]
        %v340 = vld [vmem:[%s271 + $0x48] sm:$0xff]
        %v341 = vld [vmem:[%s271 + $0x50] sm:$0xff]
        %v342 = vld [vmem:[%s271 + $0x58] sm:$0xff]
        %v343 = vld [vmem:[%s271 + $0x60] sm:$0xff]
        %v344 = vld [vmem:[%s271 + $0x68] sm:$0xff]
        %v345 = vld [vmem:[%s271 + $0x70] sm:$0xff]
        %v346 = vld [vmem:[%s271 + $0x78] sm:$0xff]
        %v347 = vld [vmem:[%s271 + $0x80] sm:$0xff]
        %v348 = vld [vmem:[%s271 + $0x88] sm:$0xff]
        %v349 = vld [vmem:[%s271 + $0x90] sm:$0xff]
        %v350 = vld [vmem:[%s271 + $0x98] sm:$0xff]
        %v351 = vld [vmem:[%s271 + $0xa0] sm:$0xff]
        %v352 = vld [vmem:[%s271 + $0xa8] sm:$0xff]
        %v353 = vld [vmem:[%s271 + $0xb0] sm:$0xff]
        %v354 = vld [vmem:[%s271 + $0xb8] sm:$0xff]
        %v355 = vld [vmem:[%s271 + $0xc0] sm:$0xff]
        %v356 = vld [vmem:[%s271 + $0xc8] sm:$0xff]
        %v357 = vld [vmem:[%s271 + $0xd0] sm:$0xff]
        %v358 = vld [vmem:[%s271 + $0xd8] sm:$0xff]
        %v359 = vld [vmem:[%s271 + $0xe0] sm:$0xff]
        %v360 = vld [vmem:[%s271 + $0xe8] sm:$0xff]
        %v361 = vld [vmem:[%s271 + $0xf0] sm:$0xff]
        %v362 = vld [vmem:[%s271 + $0xf8] sm:$0xff]
        %v363 = vld [vmem:[#allocation2] sm:$0xff]
        %v364 = vld [vmem:[#allocation2 + $0x8] sm:$0xff]
        %v365 = vld [vmem:[#allocation2 + $0x10] sm:$0xff]
        %v366 = vld [vmem:[#allocation2 + $0x18] sm:$0xff]
        %v367 = vld [vmem:[#allocation2 + $0x20] sm:$0xff]
        %v368 = vld [vmem:[#allocation2 + $0x28] sm:$0xff]
        %v369 = vld [vmem:[#allocation2 + $0x30] sm:$0xff]
        %v370 = vld [vmem:[#allocation2 + $0x38] sm:$0xff]
        %v371 = vld [vmem:[#allocation2 + $0x40] sm:$0xff]
        %v372 = vld [vmem:[#allocation2 + $0x48] sm:$0xff]
        %v373 = vld [vmem:[#allocation2 + $0x50] sm:$0xff]
        %v374 = vld [vmem:[#allocation2 + $0x58] sm:$0xff]
        %v375 = vpack.c.bf16 %v329, %v328
        %v376 = vpack.c.bf16 %v330, %v330
        %v409 = vunpack.c.l.b16 %v331
        %v410 = vunpack.c.h.b16 %v331
        %v411 = vunpack.c.l.b16 %v332
        %v412 = vunpack.c.h.b16 %v332
        %v413 = vunpack.c.l.b16 %v333
        %v414 = vunpack.c.h.b16 %v333
        %v415 = vunpack.c.l.b16 %v334
        %v416 = vunpack.c.h.b16 %v334
        %v417 = vunpack.c.l.b16 %v335
        %v418 = vunpack.c.h.b16 %v335
        %v419 = vunpack.c.l.b16 %v336
        %v420 = vunpack.c.h.b16 %v336
        %v421 = vunpack.c.l.b16 %v337
        %v422 = vunpack.c.h.b16 %v337
        %v423 = vunpack.c.l.b16 %v338
        %v424 = vunpack.c.h.b16 %v338
        %v425 = vunpack.c.l.b16 %v339
        %v426 = vunpack.c.h.b16 %v339
        %v427 = vunpack.c.l.b16 %v340
        %v428 = vunpack.c.h.b16 %v340
        %v429 = vunpack.c.l.b16 %v341
        %v430 = vunpack.c.h.b16 %v341
        %v431 = vunpack.c.l.b16 %v342
        %v432 = vunpack.c.h.b16 %v342
        %v433 = vunpack.c.l.b16 %v343
        %v434 = vunpack.c.h.b16 %v343
        %v435 = vunpack.c.l.b16 %v344
        %v436 = vunpack.c.h.b16 %v344
        %v437 = vunpack.c.l.b16 %v345
        %v438 = vunpack.c.h.b16 %v345
        %v439 = vunpack.c.l.b16 %v346
        %v440 = vunpack.c.h.b16 %v346
        %v441 = vunpack.c.l.b16 %v347
        %v442 = vunpack.c.h.b16 %v347
        %v443 = vunpack.c.l.b16 %v348
        %v444 = vunpack.c.h.b16 %v348
        %v445 = vunpack.c.l.b16 %v349
        %v446 = vunpack.c.h.b16 %v349
        %v447 = vunpack.c.l.b16 %v350
        %v448 = vunpack.c.h.b16 %v350
        %v449 = vunpack.c.l.b16 %v351
        %v450 = vunpack.c.h.b16 %v351
        %v451 = vunpack.c.l.b16 %v352
        %v452 = vunpack.c.h.b16 %v352
        %v453 = vunpack.c.l.b16 %v353
        %v454 = vunpack.c.h.b16 %v353
        %v455 = vunpack.c.l.b16 %v354
        %v456 = vunpack.c.h.b16 %v354
        %v457 = vunpack.c.l.b16 %v355
        %v458 = vunpack.c.h.b16 %v355
        %v459 = vunpack.c.l.b16 %v356
        %v460 = vunpack.c.h.b16 %v356
        %v461 = vunpack.c.l.b16 %v357
        %v462 = vunpack.c.h.b16 %v357
        %v463 = vunpack.c.l.b16 %v358
        %v464 = vunpack.c.h.b16 %v358
        %v465 = vunpack.c.l.b16 %v359
        %v466 = vunpack.c.h.b16 %v359
        %v467 = vunpack.c.l.b16 %v360
        %v468 = vunpack.c.h.b16 %v360
        %v469 = vunpack.c.l.b16 %v361
        %v470 = vunpack.c.h.b16 %v361
        %v471 = vunpack.c.l.b16 %v362
        %v472 = vunpack.c.h.b16 %v362
        %v473 = vpack.c.b16 %v413, %v409
        %v474 = vpack.c.b16 %v414, %v410
        %v475 = vpack.c.b16 %v415, %v411
        %v476 = vpack.c.b16 %v416, %v412
        %v477 = vpack.c.b16 %v421, %v417
        %v478 = vpack.c.b16 %v422, %v418
        %v479 = vpack.c.b16 %v423, %v419
        %v480 = vpack.c.b16 %v424, %v420
        %v481 = vpack.c.b16 %v429, %v425
        %v482 = vpack.c.b16 %v430, %v426
        %v483 = vpack.c.b16 %v431, %v427
        %v484 = vpack.c.b16 %v432, %v428
        %v485 = vpack.c.b16 %v437, %v433
        %v486 = vpack.c.b16 %v438, %v434
        %v487 = vpack.c.b16 %v439, %v435
        %v488 = vpack.c.b16 %v440, %v436
        %v489 = vpack.c.b16 %v445, %v441
        %v490 = vpack.c.b16 %v446, %v442
        %v491 = vpack.c.b16 %v447, %v443
        %v492 = vpack.c.b16 %v448, %v444
        %v493 = vpack.c.b16 %v453, %v449
        %v494 = vpack.c.b16 %v454, %v450
        %v495 = vpack.c.b16 %v455, %v451
        %v496 = vpack.c.b16 %v456, %v452
        %v497 = vpack.c.b16 %v461, %v457
        %v498 = vpack.c.b16 %v462, %v458
        %v499 = vpack.c.b16 %v463, %v459
        %v500 = vpack.c.b16 %v464, %v460
        %v501 = vpack.c.b16 %v469, %v465
        %v502 = vpack.c.b16 %v470, %v466
        %v503 = vpack.c.b16 %v471, %v467
        %v504 = vpack.c.b16 %v472, %v468
        %537 = vmatprep.subr.bf16.mxu0 %v474
        %538 = vmatpush1.bf16.msra.mxu0 %v473
        %539 = vmatprep.subr.bf16.mxu0 %v478
        %540 = vmatpush1.bf16.msra.mxu0 %v477
        %541 = vmatprep.subr.bf16.mxu0 %v482
        %542 = vmatpush1.bf16.msra.mxu0 %v481
        %543 = vmatprep.subr.bf16.mxu0 %v486
        %544 = vmatpush1.bf16.msra.mxu0 %v485
        %545 = vmatprep.subr.bf16.mxu0 %v490
        %546 = vmatpush1.bf16.msra.mxu0 %v489
        %547 = vmatprep.subr.bf16.mxu0 %v494
        %548 = vmatpush1.bf16.msra.mxu0 %v493
        %549 = vmatprep.subr.bf16.mxu0 %v498
        %550 = vmatpush1.bf16.msra.mxu0 %v497
        %551 = vmatprep.subr.bf16.mxu0 %v502
        %552 = vmatpush1.bf16.msra.mxu0 %v501
        %553 = vmatprep.subr.bf16.mxu0 0
        %554 = vmatpush1.bf16.msra.mxu0 0
        %555 = vmatprep.subr.bf16.mxu0 0
        %556 = vmatpush1.bf16.msra.mxu0 0
        %557 = vmatprep.subr.bf16.mxu0 0
        %558 = vmatpush1.bf16.msra.mxu0 0
        %559 = vmatprep.subr.bf16.mxu0 0
        %560 = vmatpush1.bf16.msra.mxu0 0
        %561 = vmatprep.subr.bf16.mxu0 0
        %562 = vmatpush1.bf16.msra.mxu0 0
        %563 = vmatprep.subr.bf16.mxu0 0
        %564 = vmatpush1.bf16.msra.mxu0 0
        %565 = vmatprep.subr.bf16.mxu0 0
        %566 = vmatpush1.bf16.msra.mxu0 0
        %567 = vmatprep.subr.bf16.mxu0 0
        %568 = vmatpush1.bf16.msra.mxu0 0
        %569 = vmatprep.mubr.bf16.mxu0 0
        %570 = vmatmul.mubr.bf16.gmra.mrb[0].mxu0 %v375
        %v571 = vpop.f32.mrb[0].mxu0
        %v572 = vadd.f32 0.0, %v571
        %v573 = vpop.f32.mrb[0].mxu0
        %v574 = vadd.f32 0.0, %v573
        %v575 = vpop.f32.mrb[0].mxu0
        %v576 = vadd.f32 0.0, %v575
        %v577 = vpop.f32.mrb[0].mxu0
        %v578 = vadd.f32 0.0, %v577
        %579 = vmatprep.mubr.bf16.mxu0 0
        %580 = vmatmul.mubr.bf16.gmra.mrb[0].mxu0 %v376
        %v581 = vpop.f32.mrb[0].mxu0
        %v582 = vadd.f32 0.0, %v581
        %v583 = vpop.f32.mrb[0].mxu0
        %v584 = vadd.f32 0.0, %v583
        %v585 = vpop.f32.mrb[0].mxu0
        %v586 = vpop.f32.mrb[0].mxu0
        %587 = vdwg.mxu0
        %588 = vmatprep.subr.bf16.mxu0 %v476
        %589 = vmatpush1.bf16.msra.mxu0 %v475
        %590 = vmatprep.subr.bf16.mxu0 %v480
        %591 = vmatpush1.bf16.msra.mxu0 %v479
        %592 = vmatprep.subr.bf16.mxu0 %v484
        %593 = vmatpush1.bf16.msra.mxu0 %v483
        %594 = vmatprep.subr.bf16.mxu0 %v488
        %595 = vmatpush1.bf16.msra.mxu0 %v487
        %596 = vmatprep.subr.bf16.mxu0 %v492
        %597 = vmatpush1.bf16.msra.mxu0 %v491
        %598 = vmatprep.subr.bf16.mxu0 %v496
        %599 = vmatpush1.bf16.msra.mxu0 %v495
        %600 = vmatprep.subr.bf16.mxu0 %v500
        %601 = vmatpush1.bf16.msra.mxu0 %v499
        %602 = vmatprep.subr.bf16.mxu0 %v504
        %603 = vmatpush1.bf16.msra.mxu0 %v503
        %604 = vmatprep.subr.bf16.mxu0 0
        %605 = vmatpush1.bf16.msra.mxu0 0
        %606 = vmatprep.subr.bf16.mxu0 0
        %607 = vmatpush1.bf16.msra.mxu0 0
        %608 = vmatprep.subr.bf16.mxu0 0
        %609 = vmatpush1.bf16.msra.mxu0 0
        %610 = vmatprep.subr.bf16.mxu0 0
        %611 = vmatpush1.bf16.msra.mxu0 0
        %612 = vmatprep.subr.bf16.mxu0 0
        %613 = vmatpush1.bf16.msra.mxu0 0
        %614 = vmatprep.subr.bf16.mxu0 0
        %615 = vmatpush1.bf16.msra.mxu0 0
        %616 = vmatprep.subr.bf16.mxu0 0
        %617 = vmatpush1.bf16.msra.mxu0 0
        %618 = vmatprep.subr.bf16.mxu0 0
        %619 = vmatpush1.bf16.msra.mxu0 0
        %620 = vmatprep.mubr.bf16.mxu0 0
        %621 = vmatmul.mubr.bf16.gmra.mrb[0].mxu0 %v375
        %v622 = vpop.f32.mrb[0].mxu0
        %v623 = vadd.f32 0.0, %v622
        %v624 = vpop.f32.mrb[0].mxu0
        %v625 = vadd.f32 0.0, %v624
        %v626 = vpop.f32.mrb[0].mxu0
        %v627 = vadd.f32 0.0, %v626
        %v628 = vpop.f32.mrb[0].mxu0
        %v629 = vadd.f32 0.0, %v628
        %630 = vmatprep.mubr.bf16.mxu0 0
        %631 = vmatmul.mubr.bf16.gmra.mrb[0].mxu0 %v376
        %v632 = vpop.f32.mrb[0].mxu0
        %v633 = vadd.f32 0.0, %v632
        %v634 = vpop.f32.mrb[0].mxu0
        %v635 = vadd.f32 0.0, %v634
        %v636 = vpop.f32.mrb[0].mxu0
        %v637 = vpop.f32.mrb[0].mxu0
        %638 = vdwg.mxu0
        %v639 = vadd.f32 %v363, %v572
        %v640 = vadd.f32 %v364, %v574
        %v641 = vadd.f32 %v365, %v623
        %v642 = vadd.f32 %v366, %v625
        %v643 = vadd.f32 %v367, %v576
        %v644 = vadd.f32 %v368, %v578
        %v645 = vadd.f32 %v369, %v627
        %v646 = vadd.f32 %v370, %v629
        %v647 = vadd.f32 %v371, %v582
        %v648 = vadd.f32 %v372, %v584
        %v649 = vadd.f32 %v373, %v633
        %v650 = vadd.f32 %v374, %v635
        %651 = vst [vmem:[#allocation2] sm:$0xff] %v639
        %652 = vst [vmem:[#allocation2 + $0x8] sm:$0xff] %v640
        %653 = vst [vmem:[#allocation2 + $0x10] sm:$0xff] %v641
        %654 = vst [vmem:[#allocation2 + $0x18] sm:$0xff] %v642
        %655 = vst [vmem:[#allocation2 + $0x20] sm:$0xff] %v643
        %656 = vst [vmem:[#allocation2 + $0x28] sm:$0xff] %v644
        %657 = vst [vmem:[#allocation2 + $0x30] sm:$0xff] %v645
        %658 = vst [vmem:[#allocation2 + $0x38] sm:$0xff] %v646
        %659 = vst [vmem:[#allocation2 + $0x40] sm:$0xff] %v647
        %660 = vst [vmem:[#allocation2 + $0x48] sm:$0xff] %v648
        %661 = vst [vmem:[#allocation2 + $0x50] sm:$0xff] %v649
        %662 = vst [vmem:[#allocation2 + $0x58] sm:$0xff] %v650
        %p663 = scmp.eq.s32.totalorder %s24, 1
        // Predicated region
        $region65: #{tpu_custom_call.1} parent=39 // pred_check
          %p664 = pneg %p663
        $region66: #{tpu_custom_call.1} parent=39 // pred_check_branch
          %666 = sbr.rel (%p664) target = $region68
        $region67: #{tpu_custom_call.1} parent=39 // pred_region
          %v667 = vld [vmem:[#allocation2] sm:$0xff]
          %v668 = vld [vmem:[#allocation2 + $0x8] sm:$0xff]
          %v669 = vld [vmem:[#allocation2 + $0x10] sm:$0xff]
          %v670 = vld [vmem:[#allocation2 + $0x18] sm:$0xff]
          %v671 = vld [vmem:[#allocation2 + $0x20] sm:$0xff]
          %v672 = vld [vmem:[#allocation2 + $0x28] sm:$0xff]
          %v673 = vld [vmem:[#allocation2 + $0x30] sm:$0xff]
          %v674 = vld [vmem:[#allocation2 + $0x38] sm:$0xff]
          %v675 = vld [vmem:[#allocation2 + $0x40] sm:$0xff]
          %v676 = vld [vmem:[#allocation2 + $0x48] sm:$0xff]
          %v677 = vld [vmem:[#allocation2 + $0x50] sm:$0xff]
          %v678 = vld [vmem:[#allocation2 + $0x58] sm:$0xff]
          %v679 = vld [vmem:[#allocation8] sm:$0xf]
          %v681 = vlaneseq
          %v682 = vshrl.u32 %v681, 7
          %v683 = vsub.s32 0, %v682
          %v684 = vrot.slane %v679, %v683
          %v685 = vlaneseq
          %v686 = vshrl.u32 %v685, 7
          %v687 = vsub.s32 1, %v686
          %v688 = vrot.slane %v679, %v687
          %v689 = vlaneseq
          %v690 = vshrl.u32 %v689, 7
          %v691 = vsub.s32 2, %v690
          %v692 = vrot.slane %v679, %v691
          %v693 = vlaneseq
          %v694 = vshrl.u32 %v693, 7
          %v695 = vsub.s32 3, %v694
          %v696 = vrot.slane %v679, %v695
          %v701 = vadd.f32 %v667, %v684
          %v702 = vadd.f32 %v668, %v688
          %v703 = vadd.f32 %v669, %v692
          %v704 = vadd.f32 %v670, %v696
          %v705 = vadd.f32 %v671, %v684
          %v706 = vadd.f32 %v672, %v688
          %v707 = vadd.f32 %v673, %v692
          %v708 = vadd.f32 %v674, %v696
          %v709 = vadd.f32 %v675, %v684
          %v710 = vadd.f32 %v676, %v688
          %v711 = vadd.f32 %v677, %v692
          %v712 = vadd.f32 %v678, %v696
          %v713 = vmax.f32 %v701, 0.0
          %v714 = vmax.f32 %v702, 0.0
          %v715 = vmax.f32 %v703, 0.0
          %v716 = vmax.f32 %v704, 0.0
          %v717 = vmax.f32 %v705, 0.0
          %v718 = vmax.f32 %v706, 0.0
          %v719 = vmax.f32 %v707, 0.0
          %v720 = vmax.f32 %v708, 0.0
          %v721 = vmax.f32 %v709, 0.0
          %v722 = vmax.f32 %v710, 0.0
          %v723 = vmax.f32 %v711, 0.0
          %v724 = vmax.f32 %v712, 0.0
          %v725 = vld [vmem:[#allocation9] sm:$0xf]
          %v726 = vld [vmem:[#allocation9 + $0x4] sm:$0xf]
          %v727 = vld [vmem:[#allocation9 + $0x8] sm:$0xf]
          %v728 = vld [vmem:[#allocation9 + $0xc] sm:$0xf]
          %v729 = vld [vmem:[#allocation9 + $0x10] sm:$0xf]
          %v730 = vld [vmem:[#allocation9 + $0x14] sm:$0xf]
          %v731 = vld [vmem:[#allocation9 + $0x18] sm:$0xf]
          %v732 = vld [vmem:[#allocation9 + $0x1c] sm:$0xf]
          %v733 = vld [vmem:[#allocation9 + $0x20] sm:$0xf]
          %v734 = vld [vmem:[#allocation9 + $0x24] sm:$0xf]
          %v735 = vld [vmem:[#allocation9 + $0x28] sm:$0xf]
          %v736 = vld [vmem:[#allocation9 + $0x2c] sm:$0xf]
          %v737 = vld [vmem:[#allocation9 + $0x30] sm:$0xf]
          %v738 = vld [vmem:[#allocation9 + $0x34] sm:$0xf]
          %v739 = vld [vmem:[#allocation9 + $0x38] sm:$0xf]
          %v740 = vld [vmem:[#allocation9 + $0x3c] sm:$0xf]
          %v741 = vld [vmem:[#allocation9 + $0x40] sm:$0xf]
          %v742 = vld [vmem:[#allocation9 + $0x44] sm:$0xf]
          %v743 = vld [vmem:[#allocation9 + $0x48] sm:$0xf]
          %v744 = vld [vmem:[#allocation9 + $0x4c] sm:$0xf]
          %v745 = vld [vmem:[#allocation9 + $0x50] sm:$0xf]
          %v746 = vld [vmem:[#allocation9 + $0x54] sm:$0xf]
          %v747 = vld [vmem:[#allocation9 + $0x58] sm:$0xf]
          %v748 = vld [vmem:[#allocation9 + $0x5c] sm:$0xf]
          %v749 = vld [vmem:[#allocation9 + $0x60] sm:$0xf]
          %v750 = vld [vmem:[#allocation9 + $0x64] sm:$0xf]
          %v751 = vld [vmem:[#allocation9 + $0x68] sm:$0xf]
          %v752 = vld [vmem:[#allocation9 + $0x6c] sm:$0xf]
          %v753 = vld [vmem:[#allocation9 + $0x70] sm:$0xf]
          %v754 = vld [vmem:[#allocation9 + $0x74] sm:$0xf]
          %v755 = vld [vmem:[#allocation9 + $0x78] sm:$0xf]
          %v756 = vld [vmem:[#allocation9 + $0x7c] sm:$0xf]
          %v757 = vld [vmem:[#allocation9 + $0x80] sm:$0xf]
          %v758 = vld [vmem:[#allocation9 + $0x84] sm:$0xf]
          %v759 = vld [vmem:[#allocation9 + $0x88] sm:$0xf]
          %v760 = vld [vmem:[#allocation9 + $0x8c] sm:$0xf]
          %v761 = vld [vmem:[#allocation9 + $0x90] sm:$0xf]
          %v762 = vld [vmem:[#allocation9 + $0x94] sm:$0xf]
          %v763 = vld [vmem:[#allocation9 + $0x98] sm:$0xf]
          %v764 = vld [vmem:[#allocation9 + $0x9c] sm:$0xf]
          %v765 = vld [vmem:[#allocation9 + $0xa0] sm:$0xf]
          %v766 = vld [vmem:[#allocation9 + $0xa4] sm:$0xf]
          %v767 = vld [vmem:[#allocation9 + $0xa8] sm:$0xf]
          %v768 = vld [vmem:[#allocation9 + $0xac] sm:$0xf]
          %v769 = vld [vmem:[#allocation9 + $0xb0] sm:$0xf]
          %v770 = vld [vmem:[#allocation9 + $0xb4] sm:$0xf]
          %v771 = vld [vmem:[#allocation9 + $0xb8] sm:$0xf]
          %v772 = vld [vmem:[#allocation9 + $0xbc] sm:$0xf]
          %v773 = vld [vmem:[#allocation9 + $0xc0] sm:$0xf]
          %v774 = vld [vmem:[#allocation9 + $0xc4] sm:$0xf]
          %v775 = vld [vmem:[#allocation9 + $0xc8] sm:$0xf]
          %v776 = vld [vmem:[#allocation9 + $0xcc] sm:$0xf]
          %v777 = vld [vmem:[#allocation9 + $0xd0] sm:$0xf]
          %v778 = vld [vmem:[#allocation9 + $0xd4] sm:$0xf]
          %v779 = vld [vmem:[#allocation9 + $0xd8] sm:$0xf]
          %v780 = vld [vmem:[#allocation9 + $0xdc] sm:$0xf]
          %v781 = vld [vmem:[#allocation9 + $0xe0] sm:$0xf]
          %v782 = vld [vmem:[#allocation9 + $0xe4] sm:$0xf]
          %v783 = vld [vmem:[#allocation9 + $0xe8] sm:$0xf]
          %v784 = vld [vmem:[#allocation9 + $0xec] sm:$0xf]
          %v785 = vld [vmem:[#allocation9 + $0xf0] sm:$0xf]
          %v786 = vld [vmem:[#allocation9 + $0xf4] sm:$0xf]
          %v787 = vld [vmem:[#allocation9 + $0xf8] sm:$0xf]
          %v788 = vld [vmem:[#allocation9 + $0xfc] sm:$0xf]
          %v789 = vpack.c.bf16 %v717, %v713
          %v790 = vpack.c.bf16 %v718, %v714
          %v791 = vpack.c.bf16 %v719, %v715
          %v792 = vpack.c.bf16 %v720, %v716
          %v793 = vpack.c.bf16 %v721, %v721
          %v794 = vpack.c.bf16 %v722, %v722
          %v795 = vpack.c.bf16 %v723, %v723
          %v796 = vpack.c.bf16 %v724, %v724
          %v797 = vld [vmem:[#allocation11] sm:$0x1]
          %v799 = vlaneseq
          %v800 = vshrl.u32 %v799, 7
          %v801 = vsub.s32 0, %v800
          %v802 = vrot.slane %v797, %v801
          %v868 = vunpack.c.l.b16 %v725
          %v869 = vunpack.c.l.b16 %v726
          %v870 = vunpack.c.l.b16 %v727
          %v871 = vunpack.c.l.b16 %v728
          %v872 = vunpack.c.l.b16 %v729
          %v873 = vunpack.c.l.b16 %v730
          %v874 = vunpack.c.l.b16 %v731
          %v875 = vunpack.c.l.b16 %v732
          %v876 = vunpack.c.l.b16 %v733
          %v877 = vunpack.c.l.b16 %v734
          %v878 = vunpack.c.l.b16 %v735
          %v879 = vunpack.c.l.b16 %v736
          %v880 = vunpack.c.l.b16 %v737
          %v881 = vunpack.c.l.b16 %v738
          %v882 = vunpack.c.l.b16 %v739
          %v883 = vunpack.c.l.b16 %v740
          %v884 = vunpack.c.l.b16 %v741
          %v885 = vunpack.c.l.b16 %v742
          %v886 = vunpack.c.l.b16 %v743
          %v887 = vunpack.c.l.b16 %v744
          %v888 = vunpack.c.l.b16 %v745
          %v889 = vunpack.c.l.b16 %v746
          %v890 = vunpack.c.l.b16 %v747
          %v891 = vunpack.c.l.b16 %v748
          %v892 = vunpack.c.l.b16 %v749
          %v893 = vunpack.c.l.b16 %v750
          %v894 = vunpack.c.l.b16 %v751
          %v895 = vunpack.c.l.b16 %v752
          %v896 = vunpack.c.l.b16 %v753
          %v897 = vunpack.c.l.b16 %v754
          %v898 = vunpack.c.l.b16 %v755
          %v899 = vunpack.c.l.b16 %v756
          %v900 = vunpack.c.l.b16 %v757
          %v901 = vunpack.c.l.b16 %v758
          %v902 = vunpack.c.l.b16 %v759
          %v903 = vunpack.c.l.b16 %v760
          %v904 = vunpack.c.l.b16 %v761
          %v905 = vunpack.c.l.b16 %v762
          %v906 = vunpack.c.l.b16 %v763
          %v907 = vunpack.c.l.b16 %v764
          %v908 = vunpack.c.l.b16 %v765
          %v909 = vunpack.c.l.b16 %v766
          %v910 = vunpack.c.l.b16 %v767
          %v911 = vunpack.c.l.b16 %v768
          %v912 = vunpack.c.l.b16 %v769
          %v913 = vunpack.c.l.b16 %v770
          %v914 = vunpack.c.l.b16 %v771
          %v915 = vunpack.c.l.b16 %v772
          %v916 = vunpack.c.l.b16 %v773
          %v917 = vunpack.c.l.b16 %v774
          %v918 = vunpack.c.l.b16 %v775
          %v919 = vunpack.c.l.b16 %v776
          %v920 = vunpack.c.l.b16 %v777
          %v921 = vunpack.c.l.b16 %v778
          %v922 = vunpack.c.l.b16 %v779
          %v923 = vunpack.c.l.b16 %v780
          %v924 = vunpack.c.l.b16 %v781
          %v925 = vunpack.c.l.b16 %v782
          %v926 = vunpack.c.l.b16 %v783
          %v927 = vunpack.c.l.b16 %v784
          %v928 = vunpack.c.l.b16 %v785
          %v929 = vunpack.c.l.b16 %v786
          %v930 = vunpack.c.l.b16 %v787
          %v931 = vunpack.c.l.b16 %v788
          %v932 = vpack.c.b16 %v869, %v868
          %v933 = vpack.c.b16 %v871, %v870
          %v934 = vpack.c.b16 %v873, %v872
          %v935 = vpack.c.b16 %v875, %v874
          %v936 = vpack.c.b16 %v877, %v876
          %v937 = vpack.c.b16 %v879, %v878
          %v938 = vpack.c.b16 %v881, %v880
          %v939 = vpack.c.b16 %v883, %v882
          %v940 = vpack.c.b16 %v885, %v884
          %v941 = vpack.c.b16 %v887, %v886
          %v942 = vpack.c.b16 %v889, %v888
          %v943 = vpack.c.b16 %v891, %v890
          %v944 = vpack.c.b16 %v893, %v892
          %v945 = vpack.c.b16 %v895, %v894
          %v946 = vpack.c.b16 %v897, %v896
          %v947 = vpack.c.b16 %v899, %v898
          %v948 = vpack.c.b16 %v901, %v900
          %v949 = vpack.c.b16 %v903, %v902
          %v950 = vpack.c.b16 %v905, %v904
          %v951 = vpack.c.b16 %v907, %v906
          %v952 = vpack.c.b16 %v909, %v908
          %v953 = vpack.c.b16 %v911, %v910
          %v954 = vpack.c.b16 %v913, %v912
          %v955 = vpack.c.b16 %v915, %v914
          %v956 = vpack.c.b16 %v917, %v916
          %v957 = vpack.c.b16 %v919, %v918
          %v958 = vpack.c.b16 %v921, %v920
          %v959 = vpack.c.b16 %v923, %v922
          %v960 = vpack.c.b16 %v925, %v924
          %v961 = vpack.c.b16 %v927, %v926
          %v962 = vpack.c.b16 %v929, %v928
          %v963 = vpack.c.b16 %v931, %v930
          %996 = vmatprep.subr.bf16.mxu0 0
          %997 = vmatpush1.bf16.msra.mxu0 %v932
          %998 = vmatprep.subr.bf16.mxu0 0
          %999 = vmatpush1.bf16.msra.mxu0 %v933
          %1000 = vmatprep.subr.bf16.mxu0 0
          %1001 = vmatpush1.bf16.msra.mxu0 %v934
          %1002 = vmatprep.subr.bf16.mxu0 0
          %1003 = vmatpush1.bf16.msra.mxu0 %v935
          %1004 = vmatprep.subr.bf16.mxu0 0
          %1005 = vmatpush1.bf16.msra.mxu0 %v936
          %1006 = vmatprep.subr.bf16.mxu0 0
          %1007 = vmatpush1.bf16.msra.mxu0 %v937
          %1008 = vmatprep.subr.bf16.mxu0 0
          %1009 = vmatpush1.bf16.msra.mxu0 %v938
          %1010 = vmatprep.subr.bf16.mxu0 0
          %1011 = vmatpush1.bf16.msra.mxu0 %v939
          %1012 = vmatprep.subr.bf16.mxu0 0
          %1013 = vmatpush1.bf16.msra.mxu0 %v940
          %1014 = vmatprep.subr.bf16.mxu0 0
          %1015 = vmatpush1.bf16.msra.mxu0 %v941
          %1016 = vmatprep.subr.bf16.mxu0 0
          %1017 = vmatpush1.bf16.msra.mxu0 %v942
          %1018 = vmatprep.subr.bf16.mxu0 0
          %1019 = vmatpush1.bf16.msra.mxu0 %v943
          %1020 = vmatprep.subr.bf16.mxu0 0
          %1021 = vmatpush1.bf16.msra.mxu0 %v944
          %1022 = vmatprep.subr.bf16.mxu0 0
          %1023 = vmatpush1.bf16.msra.mxu0 %v945
          %1024 = vmatprep.subr.bf16.mxu0 0
          %1025 = vmatpush1.bf16.msra.mxu0 %v946
          %1026 = vmatprep.subr.bf16.mxu0 0
          %1027 = vmatpush1.bf16.msra.mxu0 %v947
          %1028 = vmatprep.mubr.bf16.mxu0 %v790
          %1029 = vmatmul.mubr.bf16.gmra.mrb[0].mxu0 %v789
          %v1030 = vpop.f32.mrb[0].mxu0
          %v1031 = vadd.f32 %v802, %v1030
          %v1032 = vpop.f32.mrb[0].mxu0
          %v1033 = vpop.f32.mrb[0].mxu0
          %v1034 = vadd.f32 %v802, %v1033
          %v1035 = vpop.f32.mrb[0].mxu0
          %1036 = vmatprep.mubr.bf16.mxu0 %v794
          %1037 = vmatmul.mubr.bf16.gmra.mrb[0].mxu0 %v793
          %v1038 = vpop.f32.mrb[0].mxu0
          %v1039 = vadd.f32 %v802, %v1038
          %v1040 = vpop.f32.mrb[0].mxu0
          %v1041 = vpop.f32.mrb[0].mxu0
          %v1042 = vpop.f32.mrb[0].mxu0
          %1043 = vdwg.mxu0
          %1044 = vmatprep.subr.bf16.mxu0 0
          %1045 = vmatpush1.bf16.msra.mxu0 %v948
          %1046 = vmatprep.subr.bf16.mxu0 0
          %1047 = vmatpush1.bf16.msra.mxu0 %v949
          %1048 = vmatprep.subr.bf16.mxu0 0
          %1049 = vmatpush1.bf16.msra.mxu0 %v950
          %1050 = vmatprep.subr.bf16.mxu0 0
          %1051 = vmatpush1.bf16.msra.mxu0 %v951
          %1052 = vmatprep.subr.bf16.mxu0 0
          %1053 = vmatpush1.bf16.msra.mxu0 %v952
          %1054 = vmatprep.subr.bf16.mxu0 0
          %1055 = vmatpush1.bf16.msra.mxu0 %v953
          %1056 = vmatprep.subr.bf16.mxu0 0
          %1057 = vmatpush1.bf16.msra.mxu0 %v954
          %1058 = vmatprep.subr.bf16.mxu0 0
          %1059 = vmatpush1.bf16.msra.mxu0 %v955
          %1060 = vmatprep.subr.bf16.mxu0 0
          %1061 = vmatpush1.bf16.msra.mxu0 %v956
          %1062 = vmatprep.subr.bf16.mxu0 0
          %1063 = vmatpush1.bf16.msra.mxu0 %v957
          %1064 = vmatprep.subr.bf16.mxu0 0
          %1065 = vmatpush1.bf16.msra.mxu0 %v958
          %1066 = vmatprep.subr.bf16.mxu0 0
          %1067 = vmatpush1.bf16.msra.mxu0 %v959
          %1068 = vmatprep.subr.bf16.mxu0 0
          %1069 = vmatpush1.bf16.msra.mxu0 %v960
          %1070 = vmatprep.subr.bf16.mxu0 0
          %1071 = vmatpush1.bf16.msra.mxu0 %v961
          %1072 = vmatprep.subr.bf16.mxu0 0
          %1073 = vmatpush1.bf16.msra.mxu0 %v962
          %1074 = vmatprep.subr.bf16.mxu0 0
          %1075 = vmatpush1.bf16.msra.mxu0 %v963
          %1076 = vmatprep.mubr.bf16.mxu0 %v792
          %1077 = vmatmul.mubr.bf16.gmra.mrb[0].mxu0 %v791
          %v1078 = vpop.f32.mrb[0].mxu0
          %v1079 = vadd.f32 %v1031, %v1078
          %v1080 = vpop.f32.mrb[0].mxu0
          %v1081 = vpop.f32.mrb[0].mxu0
          %v1082 = vadd.f32 %v1034, %v1081
          %v1083 = vpop.f32.mrb[0].mxu0
          %1084 = vmatprep.mubr.bf16.mxu0 %v796
          %1085 = vmatmul.mubr.bf16.gmra.mrb[0].mxu0 %v795
          %v1086 = vpop.f32.mrb[0].mxu0
          %v1087 = vadd.f32 %v1039, %v1086
          %v1088 = vpop.f32.mrb[0].mxu0
          %v1089 = vpop.f32.mrb[0].mxu0
          %v1090 = vpop.f32.mrb[0].mxu0
          %1091 = vdwg.mxu0
          %vm1092 = vcmask 523264
          %1093 = vst.msk [vmem:[#allocation12] sm:$0xff] %vm1092, %v1079
          %1094 = vst.msk [vmem:[#allocation12 + $0x8] sm:$0xff] %vm1092, %v1082
          %1095 = vst.msk [vmem:[#allocation12 + $0x10] sm:$0xff] %vm1092, %v1087
        $region68: #{tpu_custom_call.1} parent=39 // pred_fallthru
          _
        // Predicated region
        $region69: #{tpu_custom_call.1} parent=39 // pred_check
          %p1096 = pneg %p152
        $region70: #{tpu_custom_call.1} parent=39 // pred_check_branch
          %1098 = sbr.rel (%p1096) target = $region72
        $region71: #{tpu_custom_call.1} parent=39 // pred_region
          %s1100 = ssub.s32 384, 384
          %1101 = vsyncadd [#allocation5], %s1100
          %s1102 = sshll.u32 [#allocation12], 4
          %s1103 = int_to_ptr.vmem [resolvable:$true] %s1102
          %1108 = dma.vmem_to_hbm [thread:$0]  %s1103, 384, %s5, [#allocation5], 128, 128, 8
        $region72: #{tpu_custom_call.1} parent=39 // pred_fallthru
          _
        // Predicated region
        $region73: #{tpu_custom_call.1} parent=39 // pred_check
          %p1109 = pneg %p152
        $region74: #{tpu_custom_call.1} parent=39 // pred_check_branch
          %1111 = sbr.rel (%p1109) target = $region76
        $region75: #{tpu_custom_call.1} parent=39 // pred_region
          %1112 = dma.done [#allocation5], 384
        $region76: #{tpu_custom_call.1} parent=39 // pred_fallthru
          _
      $region40: #{tpu_custom_call.1} parent=5 // pred_fallthru
        _
      %p1113 = scmp.le.s32.totalorder 2, %s19
      // Predicated region
      $region77: #{tpu_custom_call.1} parent=5 // pred_check
        %p1114 = pneg %p1113
      $region78: #{tpu_custom_call.1} parent=5 // pred_check_branch
        %1116 = sbr.rel (%p1114) target = $region80
      $region79: #{tpu_custom_call.1} parent=5 // pred_region
        %s1117 = ssub.s32 %s19, 2
      $region80: #{tpu_custom_call.1} parent=5 // pred_fallthru
        _
    $region6: #{tpu_custom_call.1} parent=1 // loop_footer
      %s23 = sadd.s32 1, %s19
    $region7: #{tpu_custom_call.1} parent=1 // loop_footer_branch
      %18 = sbr.rel target = $region3
    $region8: #{tpu_custom_call.1} parent=1 // loop_exit
      _
    %1118 = vsyncpa [#allocation4], 1
    %s1119 = scalar_lea.sflag [#allocation4], 1
    %1120 = vsyncpa %s1119, 1
    %1121 = vsyncpa [#allocation7], 1
    %s1122 = scalar_lea.sflag [#allocation7], 1
    %1123 = vsyncpa %s1122, 1
    %1124 = vsyncpa [#allocation10], 1
    %1125 = vsyncpa [#allocation5], 1
    %s1126 = scalar_lea.sflag [#allocation5], 1
    %1127 = vsyncpa %s1126, 1

</llo_original>
